<compile_context>
chip_gen: v7x
topology: tpu7x:2x2x1
jax: 0.10.0
libtpu: 0.0.40
codegen_flags: <defaults>
</compile_context>

<pallas_src>
import functools

import numpy as np

import jax
import jax.numpy as jnp
from jax.experimental import pallas as pl
from jax.experimental.pallas import tpu as pltpu


def _dft2_kernel(x_ref, g1_ref, m2_ref, o_ref, *, H, CW):
    """Full 2-D DFT (real + imag) of C independent [H, W] real images.

    x_ref : [H, C*W]        real input, channel-minor along lanes
    g1_ref: [C*W, 2*C*W]    [blockdiag(cos_W) | blockdiag(sin_W)]
    m2_ref: [2H, H]         [cos_H ; sin_H] stacked along sublanes
    o_ref : [2, H, C*W]     index 0 = real part, 1 = imaginary part
    """
    # Stage 1: W-axis transform for every channel in ONE matmul.
    #   pq[:, :CW]  = P = x_c @ cos_W   (per channel, channel-minor lanes)
    #   pq[:, CW:]  = Q = x_c @ sin_W
    pq = jnp.dot(x_ref[...], g1_ref[...],
                 preferred_element_type=jnp.float32)          # [H, 2*CW]

    # Stage 2: H-axis transform for every channel in ONE matmul.
    #   b[:H, :CW] = ch@P   b[:H, CW:] = ch@Q
    #   b[H:, :CW] = sh@P   b[H:, CW:] = sh@Q
    b = jnp.dot(m2_ref[...], pq,
                preferred_element_type=jnp.float32)           # [2H, 2*CW]

    # F = cos - i*sin (torch.rfft convention):
    #   Re = ch@P - sh@Q,   Im = -(sh@P + ch@Q)
    re = b[:H, :CW] - b[H:, CW:]
    im = -(b[H:, :CW] + b[:H, CW:])

    o_ref[0, :, :] = re
    o_ref[1, :, :] = im


@functools.lru_cache(maxsize=None)
def _dft_constants(C, H, W):
    """Precombined DFT matrices (numpy -> embedded constants).

    Angles use (k*m) mod n so f32 cos/sin stay accurate for large k*m."""
    def cos_sin(n):
        k = np.arange(n, dtype=np.int64)
        km = (k[:, None] * k[None, :]) % n
        ang = (2.0 * np.pi / n) * km.astype(np.float64)
        return np.cos(ang).astype(np.float32), np.sin(ang).astype(np.float32)

    cw, sw = cos_sin(W)
    ch, sh = cos_sin(H)

    eye_c = np.eye(C, dtype=np.float32)
    g1 = np.concatenate([np.kron(eye_c, cw), np.kron(eye_c, sw)],
                        axis=1)                       # [C*W, 2*C*W]
    m2 = np.concatenate([ch, sh], axis=0)             # [2H, H]
    return jnp.asarray(g1), jnp.asarray(m2)


def fft_forward(x):
    """JAX/Pallas equivalent of
         torch.rfft(x, 2, onesided=False).squeeze(0).permute(3, 0, 1, 2)
       x: [1, C, H, W] float32  ->  [2, C, H, W] float32 (real, imag)."""
    if x.ndim != 4 or x.shape[0] != 1:
        raise ValueError("FFT module expects a [1, C, H, W] input")
    _, C, H, W = x.shape
    CW = C * W

    g1, m2 = _dft_constants(C, H, W)

    # Present the input channel-minor along lanes: [H, C*W].
    xT = jnp.transpose(x[0], (1, 0, 2)).reshape(H, CW).astype(jnp.float32)

    out = pl.pallas_call(
        functools.partial(_dft2_kernel, H=H, CW=CW),
        out_shape=jax.ShapeDtypeStruct((2, H, CW), jnp.float32),
        in_specs=[pl.BlockSpec(memory_space=pltpu.MemorySpace.VMEM)
                  for _ in range(3)],
        out_specs=pl.BlockSpec(memory_space=pltpu.MemorySpace.VMEM),
    )(xT, g1, m2)

    # Lane-dense kernel output [2, H, C*W] -> [2, C, H, W] (layout plumbing
    # done by XLA in the wrapper, not inside the kernel).
    return out.reshape(2, H, C, W).transpose(0, 2, 1, 3)


if __name__ == "__main__":
    key = jax.random.PRNGKey(0)
    C, H, W = 4, 32, 32
    x = jax.random.normal(key, (1, C, H, W), jnp.float32)

    fwd = jax.jit(fft_forward)
    out = jax.block_until_ready(fwd(x))

    assert out.shape == (2, C, H, W), out.shape
    assert bool(jnp.all(jnp.isfinite(out)))

    # torch.rfft(x, 2, onesided=False) is the full complex 2-D DFT:
    # compare real/imag against jnp.fft.fft2.
    ref = jnp.fft.fft2(x[0], axes=(-2, -1))
    scale = float(jnp.max(jnp.abs(ref)))
    err_re = float(jnp.max(jnp.abs(out[0] - ref.real)))
    err_im = float(jnp.max(jnp.abs(out[1] - ref.imag)))
    assert err_re <= 2e-2 * scale + 1e-3, (err_re, scale)
    assert err_im <= 2e-2 * scale + 1e-3, (err_im, scale)

    print("KERNEL_OK")
</pallas_src>

<mosaic_0001>
module attributes {stable_mosaic.version = 11 : i64} {
  func.func @_dft2_kernel(%arg0: memref<32x128xf32, #tpu.memory_space<vmem>>, %arg1: memref<128x256xf32, #tpu.memory_space<vmem>>, %arg2: memref<64x32xf32, #tpu.memory_space<vmem>>, %arg3: memref<2x32x128xf32, #tpu.memory_space<vmem>>) attributes {dimension_semantics = [], scalar_prefetch = 0 : i64, scratch_operands = 0 : i64, tpu.core_type = #tpu.core_type<tc>} {
    %c0 = arith.constant 0 : index
    %c0_0 = arith.constant 0 : index
    %0 = vector.load %arg0[%c0, %c0_0] : memref<32x128xf32, #tpu.memory_space<vmem>>, vector<32x128xf32>
    %c0_1 = arith.constant 0 : index
    %c0_2 = arith.constant 0 : index
    %1 = vector.load %arg1[%c0_1, %c0_2] : memref<128x256xf32, #tpu.memory_space<vmem>>, vector<128x256xf32>
    %cst = arith.constant dense<0.000000e+00> : vector<32x256xf32>
    %2 = tpu.matmul %0, %1, %cst {dimension_numbers = #tpu.dot_dimension_numbers<[1], [0], [0], [1], [0, 0, 1, 1], [], []>} : vector<32x128xf32>, vector<128x256xf32>, vector<32x256xf32> -> vector<32x256xf32>
    %c0_3 = arith.constant 0 : index
    %c0_4 = arith.constant 0 : index
    %3 = vector.load %arg2[%c0_3, %c0_4] : memref<64x32xf32, #tpu.memory_space<vmem>>, vector<64x32xf32>
    %cst_5 = arith.constant dense<0.000000e+00> : vector<64x256xf32>
    %4 = tpu.matmul %3, %2, %cst_5 {dimension_numbers = #tpu.dot_dimension_numbers<[1], [0], [0], [1], [0, 0, 1, 1], [], []>} : vector<64x32xf32>, vector<32x256xf32>, vector<64x256xf32> -> vector<64x256xf32>
    %5 = vector.extract_strided_slice %4 {offsets = [0, 0], sizes = [32, 128], strides = [1, 1]} : vector<64x256xf32> to vector<32x128xf32>
    %6 = vector.extract_strided_slice %4 {offsets = [32, 128], sizes = [32, 128], strides = [1, 1]} : vector<64x256xf32> to vector<32x128xf32>
    %7 = arith.subf %5, %6 : vector<32x128xf32>
    %8 = vector.extract_strided_slice %4 {offsets = [32, 0], sizes = [32, 128], strides = [1, 1]} : vector<64x256xf32> to vector<32x128xf32>
    %9 = vector.extract_strided_slice %4 {offsets = [0, 128], sizes = [32, 128], strides = [1, 1]} : vector<64x256xf32> to vector<32x128xf32>
    %10 = arith.addf %8, %9 : vector<32x128xf32>
    %cst_6 = arith.constant 0.000000e+00 : f32
    %11 = vector.broadcast %cst_6 : f32 to vector<32x128xf32>
    %12 = arith.subf %11, %10 : vector<32x128xf32>
    %c0_7 = arith.constant 0 : index
    %c0_8 = arith.constant 0 : index
    %c0_9 = arith.constant 0 : index
    %13 = vector.load %arg3[%c0_7, %c0_8, %c0_9] : memref<2x32x128xf32, #tpu.memory_space<vmem>>, vector<1x32x128xf32>
    %14 = vector.shape_cast %13 : vector<1x32x128xf32> to vector<32x128xf32>
    %15 = vector.shape_cast %7 : vector<32x128xf32> to vector<1x32x128xf32>
    tpu.vector_store %arg3[%c0_7, %c0_8, %c0_9], %15 {strides = array<i32>} : memref<2x32x128xf32, #tpu.memory_space<vmem>>, vector<1x32x128xf32>,
    %c1 = arith.constant 1 : index
    %c0_10 = arith.constant 0 : index
    %c0_11 = arith.constant 0 : index
    %16 = vector.load %arg3[%c1, %c0_10, %c0_11] : memref<2x32x128xf32, #tpu.memory_space<vmem>>, vector<1x32x128xf32>
    %17 = vector.shape_cast %16 : vector<1x32x128xf32> to vector<32x128xf32>
    %18 = vector.shape_cast %12 : vector<32x128xf32> to vector<1x32x128xf32>
    tpu.vector_store %arg3[%c1, %c0_10, %c0_11], %18 {strides = array<i32>} : memref<2x32x128xf32, #tpu.memory_space<vmem>>, vector<1x32x128xf32>,
    return
  }
}

</mosaic_0001>

<llo_original>
// kernel: fft_forward.1
$region0: #{fft_forward.1}
  #allocation0 [shape = 'u32[]', space=smem, size = 0x4, offset = 0x4, fixed_abs, tag = 'smem constant byte address 0x4 - core index']
  #allocation1 [shape = 'u32[144,128]{1,0:T(1,128)}', space=vmem, size = 0x12000, scoped, tag = 'internal scratch']
  %s0 = inlined_call_operand.vmem [shape: f32[32,128], index: 0, kind: input, shape index: {}]
  %s1 = inlined_call_operand.vmem [shape: f32[128,256], index: 1, kind: input, shape index: {}]
  %s2 = inlined_call_operand.vmem [shape: f32[64,32], index: 2, kind: input, shape index: {}]
  %s3 = inlined_call_operand.vmem [shape: f32[2,32,128], index: 3, kind: output, shape index: {}]
  %s4 = sld [smem:[#allocation0]]
  $region22: #{fft_forward.1} parent=0
    _
  %s6 = ssub.s32 1, %s4
  %s7 = scalar_select 0, %s6, %s4
  // Predicated region
  $region2: #{fft_forward.1} parent=0 // pred_check
    _
  $region3: #{fft_forward.1} parent=0 // pred_check_branch
    %9 = sbr.rel (0) target = $region5
  $region4: #{fft_forward.1} parent=0 // pred_region
    _
  $region5: #{fft_forward.1} parent=0 // pred_fallthru
    _
  // Predicated region
  $region6: #{fft_forward.1} parent=0 // pred_check
    _
  $region7: #{fft_forward.1} parent=0 // pred_check_branch
    %11 = sbr.rel (0) target = $region9
  $region8: #{fft_forward.1} parent=0 // pred_region
    _
  $region9: #{fft_forward.1} parent=0 // pred_fallthru
    _
  // Predicated region
  $region10: #{fft_forward.1} parent=0 // pred_check
    _
  $region11: #{fft_forward.1} parent=0 // pred_check_branch
    %13 = sbr.rel (0) target = $region13
  $region12: #{fft_forward.1} parent=0 // pred_region
    _
  $region13: #{fft_forward.1} parent=0 // pred_fallthru
    _
  %v14 = vld [vmem:[%s0] sm:$0xff]
  %v15 = vld [vmem:[%s0 + $0x8] sm:$0xff]
  %v16 = vld [vmem:[%s0 + $0x10] sm:$0xff]
  %v17 = vld [vmem:[%s0 + $0x18] sm:$0xff]
  %v18 = vld [vmem:[%s1] sm:$0xff]
  %v19 = vld [vmem:[%s1 + $0x8] sm:$0xff]
  %v20 = vld [vmem:[%s1 + $0x10] sm:$0xff]
  %v21 = vld [vmem:[%s1 + $0x18] sm:$0xff]
  %v22 = vld [vmem:[%s1 + $0x20] sm:$0xff]
  %v23 = vld [vmem:[%s1 + $0x28] sm:$0xff]
  %v24 = vld [vmem:[%s1 + $0x30] sm:$0xff]
  %v25 = vld [vmem:[%s1 + $0x38] sm:$0xff]
  %v26 = vld [vmem:[%s1 + $0x40] sm:$0xff]
  %v27 = vld [vmem:[%s1 + $0x48] sm:$0xff]
  %v28 = vld [vmem:[%s1 + $0x50] sm:$0xff]
  %v29 = vld [vmem:[%s1 + $0x58] sm:$0xff]
  %v30 = vld [vmem:[%s1 + $0x60] sm:$0xff]
  %v31 = vld [vmem:[%s1 + $0x68] sm:$0xff]
  %v32 = vld [vmem:[%s1 + $0x70] sm:$0xff]
  %v33 = vld [vmem:[%s1 + $0x78] sm:$0xff]
  %v34 = vld [vmem:[%s1 + $0x80] sm:$0xff]
  %v35 = vld [vmem:[%s1 + $0x88] sm:$0xff]
  %v36 = vld [vmem:[%s1 + $0x90] sm:$0xff]
  %v37 = vld [vmem:[%s1 + $0x98] sm:$0xff]
  %v38 = vld [vmem:[%s1 + $0xa0] sm:$0xff]
  %v39 = vld [vmem:[%s1 + $0xa8] sm:$0xff]
  %v40 = vld [vmem:[%s1 + $0xb0] sm:$0xff]
  %v41 = vld [vmem:[%s1 + $0xb8] sm:$0xff]
  %v42 = vld [vmem:[%s1 + $0xc0] sm:$0xff]
  %v43 = vld [vmem:[%s1 + $0xc8] sm:$0xff]
  %v44 = vld [vmem:[%s1 + $0xd0] sm:$0xff]
  %v45 = vld [vmem:[%s1 + $0xd8] sm:$0xff]
  %v46 = vld [vmem:[%s1 + $0xe0] sm:$0xff]
  %v47 = vld [vmem:[%s1 + $0xe8] sm:$0xff]
  %v48 = vld [vmem:[%s1 + $0xf0] sm:$0xff]
  %v49 = vld [vmem:[%s1 + $0xf8] sm:$0xff]
  %50 = vmatprep.subr.mxu0 %v19
  %51 = vmatpush1.msra.mxu0 %v18
  %52 = vmatprep.subr.mxu0 %v21
  %53 = vmatpush1.msra.mxu0 %v20
  %54 = vmatprep.subr.mxu0 %v23
  %55 = vmatpush1.msra.mxu0 %v22
  %56 = vmatprep.subr.mxu0 %v25
  %57 = vmatpush1.msra.mxu0 %v24
  %58 = vmatprep.subr.mxu0 %v27
  %59 = vmatpush1.msra.mxu0 %v26
  %60 = vmatprep.subr.mxu0 %v29
  %61 = vmatpush1.msra.mxu0 %v28
  %62 = vmatprep.subr.mxu0 %v31
  %63 = vmatpush1.msra.mxu0 %v30
  %64 = vmatprep.subr.mxu0 %v33
  %65 = vmatpush1.msra.mxu0 %v32
  %66 = vmatprep.subr.mxu0 %v35
  %67 = vmatpush1.msra.mxu0 %v34
  %68 = vmatprep.subr.mxu0 %v37
  %69 = vmatpush1.msra.mxu0 %v36
  %70 = vmatprep.subr.mxu0 %v39
  %71 = vmatpush1.msra.mxu0 %v38
  %72 = vmatprep.subr.mxu0 %v41
  %73 = vmatpush1.msra.mxu0 %v40
  %74 = vmatprep.subr.mxu0 %v43
  %75 = vmatpush1.msra.mxu0 %v42
  %76 = vmatprep.subr.mxu0 %v45
  %77 = vmatpush1.msra.mxu0 %v44
  %78 = vmatprep.subr.mxu0 %v47
  %79 = vmatpush1.msra.mxu0 %v46
  %80 = vmatprep.subr.mxu0 %v49
  %81 = vmatpush1.msra.mxu0 %v48
  %82 = vmatprep.subr.mxu0 0.0
  %83 = vmatpush1.msra.mxu0 0.0
  %84 = vmatprep.subr.mxu0 0.0
  %85 = vmatpush1.msra.mxu0 0.0
  %86 = vmatprep.subr.mxu0 0.0
  %87 = vmatpush1.msra.mxu0 0.0
  %88 = vmatprep.subr.mxu0 0.0
  %89 = vmatpush1.msra.mxu0 0.0
  %90 = vmatprep.subr.mxu0 0.0
  %91 = vmatpush1.msra.mxu0 0.0
  %92 = vmatprep.subr.mxu0 0.0
  %93 = vmatpush1.msra.mxu0 0.0
  %94 = vmatprep.subr.mxu0 0.0
  %95 = vmatpush1.msra.mxu0 0.0
  %96 = vmatprep.subr.mxu0 0.0
  %97 = vmatpush1.msra.mxu0 0.0
  %98 = vmatprep.subr.mxu0 0.0
  %99 = vmatpush1.msra.mxu0 0.0
  %100 = vmatprep.subr.mxu0 0.0
  %101 = vmatpush1.msra.mxu0 0.0
  %102 = vmatprep.subr.mxu0 0.0
  %103 = vmatpush1.msra.mxu0 0.0
  %104 = vmatprep.subr.mxu0 0.0
  %105 = vmatpush1.msra.mxu0 0.0
  %106 = vmatprep.subr.mxu0 0.0
  %107 = vmatpush1.msra.mxu0 0.0
  %108 = vmatprep.subr.mxu0 0.0
  %109 = vmatpush1.msra.mxu0 0.0
  %110 = vmatprep.subr.mxu0 0.0
  %111 = vmatpush1.msra.mxu0 0.0
  %112 = vmatprep.subr.mxu0 0.0
  %113 = vmatpush1.msra.mxu0 0.0
  %114 = vmatprep.mubr.f32.mxu0 0.0
  %115 = vmatmul.mubr.f32.gmra.mrb[0].mxu0 %v14
  %v116 = vpop.f32.mrb[0].mxu0
  %v117 = vadd.f32 0.0, %v116
  %v118 = vpop.f32.mrb[0].mxu0
  %v119 = vadd.f32 0.0, %v118
  %120 = vmatprep.mubr.f32.mxu0 0.0
  %121 = vmatmul.mubr.f32.gmra.mrb[0].mxu0 %v15
  %v122 = vpop.f32.mrb[0].mxu0
  %v123 = vadd.f32 0.0, %v122
  %v124 = vpop.f32.mrb[0].mxu0
  %v125 = vadd.f32 0.0, %v124
  %126 = vmatprep.mubr.f32.mxu0 0.0
  %127 = vmatmul.mubr.f32.gmra.mrb[0].mxu0 %v16
  %v128 = vpop.f32.mrb[0].mxu0
  %v129 = vadd.f32 0.0, %v128
  %v130 = vpop.f32.mrb[0].mxu0
  %v131 = vadd.f32 0.0, %v130
  %132 = vmatprep.mubr.f32.mxu0 0.0
  %133 = vmatmul.mubr.f32.gmra.mrb[0].mxu0 %v17
  %v134 = vpop.f32.mrb[0].mxu0
  %v135 = vadd.f32 0.0, %v134
  %v136 = vpop.f32.mrb[0].mxu0
  %v137 = vadd.f32 0.0, %v136
  %138 = vdwg.mxu0
  %v139 = vld [vmem:[%s2] sm:$0xff]
  %v140 = vld [vmem:[%s2 + $0x8] sm:$0xff]
  %v141 = vld [vmem:[%s2 + $0x10] sm:$0xff]
  %v142 = vld [vmem:[%s2 + $0x18] sm:$0xff]
  %v143 = vld [vmem:[%s2 + $0x20] sm:$0xff]
  %v144 = vld [vmem:[%s2 + $0x28] sm:$0xff]
  %v145 = vld [vmem:[%s2 + $0x30] sm:$0xff]
  %v146 = vld [vmem:[%s2 + $0x38] sm:$0xff]
  %vm147 = vcmask 261120
  %v149 = vsel %vm147, %v139, 0
  %v152 = vsel %vm147, %v140, 0
  %v155 = vsel %vm147, %v141, 0
  %v158 = vsel %vm147, %v142, 0
  %v161 = vsel %vm147, %v143, 0
  %v164 = vsel %vm147, %v144, 0
  %v167 = vsel %vm147, %v145, 0
  %v170 = vsel %vm147, %v146, 0
  %172 = vmatprep.subr.mxu0 %v119
  %173 = vmatpush1.msra.mxu0 %v117
  %174 = vmatprep.subr.mxu0 %v125
  %175 = vmatpush1.msra.mxu0 %v123
  %176 = vmatprep.subr.mxu0 %v131
  %177 = vmatpush1.msra.mxu0 %v129
  %178 = vmatprep.subr.mxu0 %v137
  %179 = vmatpush1.msra.mxu0 %v135
  %180 = vmatprep.subr.mxu0 0.0
  %181 = vmatpush1.msra.mxu0 0.0
  %182 = vmatprep.subr.mxu0 0.0
  %183 = vmatpush1.msra.mxu0 0.0
  %184 = vmatprep.subr.mxu0 0.0
  %185 = vmatpush1.msra.mxu0 0.0
  %186 = vmatprep.subr.mxu0 0.0
  %187 = vmatpush1.msra.mxu0 0.0
  %188 = vmatprep.subr.mxu0 0.0
  %189 = vmatpush1.msra.mxu0 0.0
  %190 = vmatprep.subr.mxu0 0.0
  %191 = vmatpush1.msra.mxu0 0.0
  %192 = vmatprep.subr.mxu0 0.0
  %193 = vmatpush1.msra.mxu0 0.0
  %194 = vmatprep.subr.mxu0 0.0
  %195 = vmatpush1.msra.mxu0 0.0
  %196 = vmatprep.subr.mxu0 0.0
  %197 = vmatpush1.msra.mxu0 0.0
  %198 = vmatprep.subr.mxu0 0.0
  %199 = vmatpush1.msra.mxu0 0.0
  %200 = vmatprep.subr.mxu0 0.0
  %201 = vmatpush1.msra.mxu0 0.0
  %202 = vmatprep.subr.mxu0 0.0
  %203 = vmatpush1.msra.mxu0 0.0
  %204 = vmatprep.subr.mxu0 0.0
  %205 = vmatpush1.msra.mxu0 0.0
  %206 = vmatprep.subr.mxu0 0.0
  %207 = vmatpush1.msra.mxu0 0.0
  %208 = vmatprep.subr.mxu0 0.0
  %209 = vmatpush1.msra.mxu0 0.0
  %210 = vmatprep.subr.mxu0 0.0
  %211 = vmatpush1.msra.mxu0 0.0
  %212 = vmatprep.subr.mxu0 0.0
  %213 = vmatpush1.msra.mxu0 0.0
  %214 = vmatprep.subr.mxu0 0.0
  %215 = vmatpush1.msra.mxu0 0.0
  %216 = vmatprep.subr.mxu0 0.0
  %217 = vmatpush1.msra.mxu0 0.0
  %218 = vmatprep.subr.mxu0 0.0
  %219 = vmatpush1.msra.mxu0 0.0
  %220 = vmatprep.subr.mxu0 0.0
  %221 = vmatpush1.msra.mxu0 0.0
  %222 = vmatprep.subr.mxu0 0.0
  %223 = vmatpush1.msra.mxu0 0.0
  %224 = vmatprep.subr.mxu0 0.0
  %225 = vmatpush1.msra.mxu0 0.0
  %226 = vmatprep.subr.mxu0 0.0
  %227 = vmatpush1.msra.mxu0 0.0
  %228 = vmatprep.subr.mxu0 0.0
  %229 = vmatpush1.msra.mxu0 0.0
  %230 = vmatprep.subr.mxu0 0.0
  %231 = vmatpush1.msra.mxu0 0.0
  %232 = vmatprep.subr.mxu0 0.0
  %233 = vmatpush1.msra.mxu0 0.0
  %234 = vmatprep.subr.mxu0 0.0
  %235 = vmatpush1.msra.mxu0 0.0
  %236 = vmatprep.mubr.f32.mxu0 0.0
  %237 = vmatmul.mubr.f32.gmra.mrb[0].mxu0 %v149
  %v238 = vpop.f32.mrb[0].mxu0
  %v239 = vadd.f32 0.0, %v238
  %v240 = vpop.f32.mrb[0].mxu0
  %v241 = vadd.f32 0.0, %v240
  %242 = vmatprep.mubr.f32.mxu0 0.0
  %243 = vmatmul.mubr.f32.gmra.mrb[0].mxu0 %v152
  %v244 = vpop.f32.mrb[0].mxu0
  %v245 = vadd.f32 0.0, %v244
  %v246 = vpop.f32.mrb[0].mxu0
  %v247 = vadd.f32 0.0, %v246
  %248 = vmatprep.mubr.f32.mxu0 0.0
  %249 = vmatmul.mubr.f32.gmra.mrb[0].mxu0 %v155
  %v250 = vpop.f32.mrb[0].mxu0
  %v251 = vadd.f32 0.0, %v250
  %v252 = vpop.f32.mrb[0].mxu0
  %v253 = vadd.f32 0.0, %v252
  %254 = vmatprep.mubr.f32.mxu0 0.0
  %255 = vmatmul.mubr.f32.gmra.mrb[0].mxu0 %v158
  %v256 = vpop.f32.mrb[0].mxu0
  %v257 = vadd.f32 0.0, %v256
  %v258 = vpop.f32.mrb[0].mxu0
  %v259 = vadd.f32 0.0, %v258
  %260 = vmatprep.mubr.f32.mxu0 0.0
  %261 = vmatmul.mubr.f32.gmra.mrb[0].mxu0 %v161
  %v262 = vpop.f32.mrb[0].mxu0
  %v263 = vadd.f32 0.0, %v262
  %v264 = vpop.f32.mrb[0].mxu0
  %v265 = vadd.f32 0.0, %v264
  %266 = vmatprep.mubr.f32.mxu0 0.0
  %267 = vmatmul.mubr.f32.gmra.mrb[0].mxu0 %v164
  %v268 = vpop.f32.mrb[0].mxu0
  %v269 = vadd.f32 0.0, %v268
  %v270 = vpop.f32.mrb[0].mxu0
  %v271 = vadd.f32 0.0, %v270
  %272 = vmatprep.mubr.f32.mxu0 0.0
  %273 = vmatmul.mubr.f32.gmra.mrb[0].mxu0 %v167
  %v274 = vpop.f32.mrb[0].mxu0
  %v275 = vadd.f32 0.0, %v274
  %v276 = vpop.f32.mrb[0].mxu0
  %v277 = vadd.f32 0.0, %v276
  %278 = vmatprep.mubr.f32.mxu0 0.0
  %279 = vmatmul.mubr.f32.gmra.mrb[0].mxu0 %v170
  %v280 = vpop.f32.mrb[0].mxu0
  %v281 = vadd.f32 0.0, %v280
  %v282 = vpop.f32.mrb[0].mxu0
  %v283 = vadd.f32 0.0, %v282
  %284 = vdwg.mxu0
  %v285 = vsub.f32 %v239, %v265
  %v286 = vsub.f32 %v245, %v271
  %v287 = vsub.f32 %v251, %v277
  %v288 = vsub.f32 %v257, %v283
  %v289 = vadd.f32 %v263, %v241
  %v290 = vadd.f32 %v269, %v247
  %v291 = vadd.f32 %v275, %v253
  %v292 = vadd.f32 %v281, %v259
  %v293 = vsub.f32 0.0, %v289
  %v294 = vsub.f32 0.0, %v290
  %v295 = vsub.f32 0.0, %v291
  %v296 = vsub.f32 0.0, %v292
  %297 = vst [vmem:[%s3] sm:$0xff] %v285
  %298 = vst [vmem:[%s3 + $0x8] sm:$0xff] %v286
  %299 = vst [vmem:[%s3 + $0x10] sm:$0xff] %v287
  %300 = vst [vmem:[%s3 + $0x18] sm:$0xff] %v288
  %s301 = scalar_lea.vmem %s3, 32
  %302 = vst [vmem:[%s301] sm:$0xff] %v293
  %303 = vst [vmem:[%s301 + $0x8] sm:$0xff] %v294
  %304 = vst [vmem:[%s301 + $0x10] sm:$0xff] %v295
  %305 = vst [vmem:[%s301 + $0x18] sm:$0xff] %v296
  // Predicated region
  $region14: #{fft_forward.1} parent=0 // pred_check
    _
  $region15: #{fft_forward.1} parent=0 // pred_check_branch
    %307 = sbr.rel (0) target = $region17
  $region16: #{fft_forward.1} parent=0 // pred_region
    _
  $region17: #{fft_forward.1} parent=0 // pred_fallthru
    _
  // Predicated region
  $region18: #{fft_forward.1} parent=0 // pred_check
    _
  $region19: #{fft_forward.1} parent=0 // pred_check_branch
    %309 = sbr.rel (0) target = $region21
  $region20: #{fft_forward.1} parent=0 // pred_region
    _
  $region21: #{fft_forward.1} parent=0 // pred_fallthru
    _

</llo_original>
